<compile_context>
chip_gen: v7x
topology: tpu7x:2x2x1
jax: 0.10.0
libtpu: 0.0.40
codegen_flags: <defaults>
</compile_context>

<pallas_src>
import functools

import numpy as np
import jax
import jax.numpy as jnp
from jax.experimental import pallas as pl
from jax.experimental.pallas import tpu as pltpu  # noqa: F401  (not required at these shapes)

# ---------------------------------------------------------------------------
# Model hyper-parameters (small, consistent with the module's __init__)
# ---------------------------------------------------------------------------
EMBED_DIM = 32
HEADS = 4
HEAD_DIM = 16
INNER_DIM = HEADS * HEAD_DIM          # 64
SCALE = HEAD_DIM ** (-0.5)
LN_EPS = 1e-5

BATCH = 2
SEQ = 8


def attention_kernel(x_ref, wmask_ref, woutp_ref, o_ref, *, heads, head_dim):
    """Single invocation (no grid).

    x_ref    : (BN, D)                  tokens (batch flattened outside; free reshape)
    wmask_ref: (4, INNER, INNER) f32    packed QKV weights + constant masks:
                 [0, :D,   :]   Wq^T * scale
                 [0, D:2D, :]   Wk^T
                 [1, :D,   :]   Wv^T
                 [1, D:D+BN, :] same-batch mask            (BN, H*BN)
                 [2]            head block-diagonal mask   (H*BN, INNER)
                 [3]            per-head-block sum matrix  (H*BN, H*BN)
    woutp_ref: (INNER+8, D) f32         packed output projection + LN affine:
                 [:INNER]   Wout^T
                 [INNER]    LayerNorm gamma
                 [INNER+1]  LayerNorm beta
                 [INNER+2]  output bias
    o_ref    : (BN, D)
    """
    bn, d = x_ref.shape
    inner = heads * head_dim

    x = x_ref[...].astype(jnp.float32)

    gamma = woutp_ref[inner:inner + 1, :]            # (1, D)
    beta = woutp_ref[inner + 1:inner + 2, :]         # (1, D)
    bout = woutp_ref[inner + 2:inner + 3, :]         # (1, D)

    # ---- LayerNorm over last dim (eps=1e-5, affine); stays f32 (v5e VPU) ----
    mean = jnp.mean(x, axis=-1, keepdims=True)
    xc = x - mean
    var = jnp.mean(xc * xc, axis=-1, keepdims=True)
    xn = xc * jax.lax.rsqrt(var + LN_EPS) * gamma + beta

    # ---- Q/K/V projections: static sub-views of the packed bundle, no lane
    #      shuffles; attention scale pre-folded into Wq at init time. ----
    q = jnp.dot(xn, wmask_ref[0, :d, :], preferred_element_type=jnp.float32)       # (BN, INNER)
    k = jnp.dot(xn, wmask_ref[0, d:2 * d, :], preferred_element_type=jnp.float32)  # (BN, INNER)
    v = jnp.dot(xn, wmask_ref[1, :d, :], preferred_element_type=jnp.float32)       # (BN, INNER)

    # ---- Block-diagonal expansion of K and V over heads (precomputed mask:
    #      no per-call iota/div/cmp VALU work). ----
    head_mask = wmask_ref[2]                                        # (H*BN, INNER)
    k_bd = jnp.concatenate([k] * heads, axis=0) * head_mask         # (H*BN, INNER)
    v_bd = jnp.concatenate([v] * heads, axis=0) * head_mask         # (H*BN, INNER)

    # ---- All-head scores in a single matmul: s[i, h*BN + j] = q_h[i] . k_h[j] ----
    s = jax.lax.dot_general(q, k_bd, (((1,), (1,)), ((), ())),
                            preferred_element_type=jnp.float32)     # (BN, H*BN)

    # ---- Softmax per (row, head-block): shared row-max shift (exact — it
    #      cancels per block), cross-batch entries zeroed in the numerator
    #      AFTER exp (no -inf / NaN hazard), per-block denominator via one
    #      matmul, EUP approx reciprocal. ----
    s = s - jnp.max(s, axis=-1, keepdims=True)
    same_batch = wmask_ref[1, d:d + bn, :]                          # (BN, H*BN)
    e = jnp.exp(s) * same_batch
    denom = jnp.dot(e, wmask_ref[3], preferred_element_type=jnp.float32)
    attn = e * pl.reciprocal(denom, approx=True)

    # ---- attn @ V for all heads; result lands directly in 'b n (h d)' layout ----
    out = jnp.dot(attn, v_bd, preferred_element_type=jnp.float32)   # (BN, INNER)

    # ---- Output projection (Linear with bias); dropout p=0 is identity ----
    proj = jnp.dot(out, woutp_ref[:inner, :],
                   preferred_element_type=jnp.float32) + bout
    o_ref[...] = proj.astype(o_ref.dtype)


@jax.jit
def attention_forward(x, wmask, woutp):
    """x: (B, N, D). `wmask` / `woutp` are the packed parameter bundles built
    once at init time by pack_params()."""
    B, N, D = x.shape
    bn = B * N
    hbn = HEADS * bn
    inner = INNER_DIM
    x2 = x.reshape(bn, D)               # free metadata reshape

    # Advisory cost estimate so XLA can overlap this tiny call with neighbours.
    flops = 2 * bn * (3 * D * inner          # QKV projections
                      + inner * hbn          # scores
                      + hbn * hbn            # per-block softmax denominators
                      + hbn * inner          # attn @ V
                      + inner * D)           # output projection
    transcendentals = 2 * bn * hbn + bn      # exp + reciprocal + rsqrt
    bytes_accessed = 4 * (x2.size + wmask.size + woutp.size + bn * D)

    kern = functools.partial(attention_kernel, heads=HEADS, head_dim=HEAD_DIM)
    out2 = pl.pallas_call(
        kern,
        out_shape=jax.ShapeDtypeStruct((bn, D), x.dtype),
        # No grid: single invocation; every operand is a full-array VMEM block,
        # DMA'd exactly once (3 input descriptors + 1 output).
        cost_estimate=pl.CostEstimate(flops=flops,
                                      transcendentals=transcendentals,
                                      bytes_accessed=bytes_accessed),
    )(x2, wmask, woutp)
    return out2.reshape(B, N, D)        # free metadata reshape


def pack_params(w_qkv, w_out, gamma, beta, b_out, *, batch, seq):
    """One-time parameter preprocessing (init time, NOT per forward).

    Returns:
      wmask : (4, INNER, INNER) f32  — QKV weights (transposed, scale folded
              into Wq) + the three shape-only constant masks.
      woutp : (INNER+8, D) f32       — Wout^T, LN gamma, LN beta, output bias.
    """
    D, H, hd = EMBED_DIM, HEADS, HEAD_DIM
    inner = H * hd
    bn = batch * seq
    hbn = H * bn
    # Packing-layout assumptions for this fixed-shape script.
    assert 2 * D <= inner and D + bn <= inner and hbn == inner

    wq_t = w_qkv[:inner, :].T * SCALE          # scale folded into Wq
    wk_t = w_qkv[inner:2 * inner, :].T
    wv_t = w_qkv[2 * inner:, :].T

    # Compile-time-constant masks (depend only on static shapes) — hoisted out
    # of the kernel so no iota/div/cmp work is re-issued per call.
    r = np.arange(hbn)
    lane = np.arange(inner)
    tok = np.arange(bn)
    head_mask = (r[:, None] // bn == lane[None, :] // hd).astype(np.float32)       # (H*BN, INNER)
    block_sum = (r[:, None] // bn == r[None, :] // bn).astype(np.float32)          # (H*BN, H*BN)
    same_batch = (tok[:, None] // seq == (r[None, :] % bn) // seq).astype(np.float32)  # (BN, H*BN)

    wmask = jnp.zeros((4, inner, inner), jnp.float32)
    wmask = wmask.at[0, :D, :].set(wq_t)
    wmask = wmask.at[0, D:2 * D, :].set(wk_t)
    wmask = wmask.at[1, :D, :].set(wv_t)
    wmask = wmask.at[1, D:D + bn, :].set(jnp.asarray(same_batch))
    wmask = wmask.at[2].set(jnp.asarray(head_mask))
    wmask = wmask.at[3].set(jnp.asarray(block_sum))

    woutp = jnp.zeros((inner + 8, D), jnp.float32)
    woutp = woutp.at[:inner, :].set(w_out.T)
    woutp = woutp.at[inner, :].set(gamma)
    woutp = woutp.at[inner + 1, :].set(beta)
    woutp = woutp.at[inner + 2, :].set(b_out)
    return wmask, woutp


def reference_forward(x, gamma, beta, w_qkv, w_out, b_out):
    """Pure-JAX reference mirroring the PyTorch module (PyTorch weight layout)."""
    xf = x.astype(jnp.float32)
    mean = jnp.mean(xf, axis=-1, keepdims=True)
    var = jnp.mean((xf - mean) ** 2, axis=-1, keepdims=True)
    xn = (xf - mean) / jnp.sqrt(var + LN_EPS) * gamma + beta
    qkv = xn @ w_qkv.T                                     # (B, N, 3*INNER)
    q, k, v = jnp.split(qkv, 3, axis=-1)

    def to_heads(t):
        b, n, _ = t.shape
        return t.reshape(b, n, HEADS, HEAD_DIM).transpose(0, 2, 1, 3)

    q, k, v = map(to_heads, (q, k, v))
    dots = jnp.einsum("bhnd,bhmd->bhnm", q, k) * SCALE
    attn = jax.nn.softmax(dots, axis=-1)
    out = jnp.einsum("bhnm,bhmd->bhnd", attn, v)
    b, h, n, hd = out.shape
    out = out.transpose(0, 2, 1, 3).reshape(b, n, h * hd)
    return out @ w_out.T + b_out


if __name__ == "__main__":
    key = jax.random.PRNGKey(0)
    kx, kg, kb, kqkv, kwo, kbo = jax.random.split(key, 6)

    x = jax.random.normal(kx, (BATCH, SEQ, EMBED_DIM), dtype=jnp.float32)

    # Parameters in PyTorch convention (shapes follow the nn.Module).
    gamma = jnp.ones((EMBED_DIM,), jnp.float32) + 0.1 * jax.random.normal(kg, (EMBED_DIM,))
    beta = 0.1 * jax.random.normal(kb, (EMBED_DIM,))
    w_qkv = 0.05 * jax.random.normal(kqkv, (3 * INNER_DIM, EMBED_DIM), dtype=jnp.float32)
    w_out = 0.05 * jax.random.normal(kwo, (EMBED_DIM, INNER_DIM), dtype=jnp.float32)
    b_out = 0.05 * jax.random.normal(kbo, (EMBED_DIM,), dtype=jnp.float32)

    # One-time packing of all kernel parameters into two operand bundles.
    wmask, woutp = pack_params(w_qkv, w_out, gamma, beta, b_out,
                               batch=BATCH, seq=SEQ)

    out = attention_forward(x, wmask, woutp)
    out = jax.block_until_ready(out)

    ref = reference_forward(x, gamma, beta, w_qkv, w_out, b_out)
    assert out.shape == (BATCH, SEQ, EMBED_DIM)
    # Tolerance 2e-3: pl.reciprocal(approx=True) in the softmax denominator is
    # an EUP approximation; error is well below this bound for these shapes.
    assert jnp.allclose(out, ref, atol=2e-3, rtol=2e-3), "mismatch vs reference"

    print("KERNEL_OK")
</pallas_src>

<mosaic_0001>
module attributes {stable_mosaic.version = 11 : i64} {
  func.func @attention_kernel(%arg0: memref<16x32xf32, #tpu.memory_space<vmem>>, %arg1: memref<4x64x64xf32, #tpu.memory_space<vmem>>, %arg2: memref<72x32xf32, #tpu.memory_space<vmem>>, %arg3: memref<16x32xf32, #tpu.memory_space<vmem>>) attributes {dimension_semantics = [], scalar_prefetch = 0 : i64, scratch_operands = 0 : i64, tpu.core_type = #tpu.core_type<tc>} {
    %c0 = arith.constant 0 : index
    %c0_0 = arith.constant 0 : index
    %0 = vector.load %arg0[%c0, %c0_0] : memref<16x32xf32, #tpu.memory_space<vmem>>, vector<16x32xf32>
    %c64 = arith.constant 64 : index
    %c0_1 = arith.constant 0 : index
    %1 = vector.load %arg2[%c64, %c0_1] : memref<72x32xf32, #tpu.memory_space<vmem>>, vector<1x32xf32>
    %c65 = arith.constant 65 : index
    %c0_2 = arith.constant 0 : index
    %2 = vector.load %arg2[%c65, %c0_2] : memref<72x32xf32, #tpu.memory_space<vmem>>, vector<1x32xf32>
    %c66 = arith.constant 66 : index
    %c0_3 = arith.constant 0 : index
    %3 = vector.load %arg2[%c66, %c0_3] : memref<72x32xf32, #tpu.memory_space<vmem>>, vector<1x32xf32>
    %cst = arith.constant dense<0.000000e+00> : vector<16xf32>
    %4 = vector.multi_reduction <add>, %0, %cst [1] : vector<16x32xf32> to vector<16xf32>
    %5 = vector.shape_cast %4 : vector<16xf32> to vector<16x1xf32>
    %cst_4 = arith.constant 3.200000e+01 : f32
    %6 = vector.broadcast %cst_4 : f32 to vector<16x1xf32>
    %7 = arith.divf %5, %6 : vector<16x1xf32>
    %8 = vector.broadcast %7 : vector<16x1xf32> to vector<16x32xf32>
    %9 = arith.subf %0, %8 : vector<16x32xf32>
    %10 = arith.mulf %9, %9 : vector<16x32xf32>
    %cst_5 = arith.constant dense<0.000000e+00> : vector<16xf32>
    %11 = vector.multi_reduction <add>, %10, %cst_5 [1] : vector<16x32xf32> to vector<16xf32>
    %12 = vector.shape_cast %11 : vector<16xf32> to vector<16x1xf32>
    %cst_6 = arith.constant 3.200000e+01 : f32
    %13 = vector.broadcast %cst_6 : f32 to vector<16x1xf32>
    %14 = arith.divf %12, %13 : vector<16x1xf32>
    %cst_7 = arith.constant 9.99999974E-6 : f32
    %15 = vector.broadcast %cst_7 : f32 to vector<16x1xf32>
    %16 = arith.addf %14, %15 : vector<16x1xf32>
    %17 = math.rsqrt %16 : vector<16x1xf32>
    %18 = vector.broadcast %17 : vector<16x1xf32> to vector<16x32xf32>
    %19 = arith.mulf %9, %18 : vector<16x32xf32>
    %20 = vector.broadcast %1 : vector<1x32xf32> to vector<16x32xf32>
    %21 = arith.mulf %19, %20 : vector<16x32xf32>
    %22 = vector.broadcast %2 : vector<1x32xf32> to vector<16x32xf32>
    %23 = arith.addf %21, %22 : vector<16x32xf32>
    %c0_8 = arith.constant 0 : index
    %c0_9 = arith.constant 0 : index
    %c0_10 = arith.constant 0 : index
    %24 = vector.load %arg1[%c0_8, %c0_9, %c0_10] : memref<4x64x64xf32, #tpu.memory_space<vmem>>, vector<1x32x64xf32>
    %25 = vector.shape_cast %24 : vector<1x32x64xf32> to vector<32x64xf32>
    %cst_11 = arith.constant dense<0.000000e+00> : vector<16x64xf32>
    %26 = tpu.matmul %23, %25, %cst_11 {dimension_numbers = #tpu.dot_dimension_numbers<[1], [0], [0], [1], [0, 0, 1, 1], [], []>} : vector<16x32xf32>, vector<32x64xf32>, vector<16x64xf32> -> vector<16x64xf32>
    %c0_12 = arith.constant 0 : index
    %c32 = arith.constant 32 : index
    %c0_13 = arith.constant 0 : index
    %27 = vector.load %arg1[%c0_12, %c32, %c0_13] : memref<4x64x64xf32, #tpu.memory_space<vmem>>, vector<1x32x64xf32>
    %28 = vector.shape_cast %27 : vector<1x32x64xf32> to vector<32x64xf32>
    %cst_14 = arith.constant dense<0.000000e+00> : vector<16x64xf32>
    %29 = tpu.matmul %23, %28, %cst_14 {dimension_numbers = #tpu.dot_dimension_numbers<[1], [0], [0], [1], [0, 0, 1, 1], [], []>} : vector<16x32xf32>, vector<32x64xf32>, vector<16x64xf32> -> vector<16x64xf32>
    %c1 = arith.constant 1 : index
    %c0_15 = arith.constant 0 : index
    %c0_16 = arith.constant 0 : index
    %30 = vector.load %arg1[%c1, %c0_15, %c0_16] : memref<4x64x64xf32, #tpu.memory_space<vmem>>, vector<1x32x64xf32>
    %31 = vector.shape_cast %30 : vector<1x32x64xf32> to vector<32x64xf32>
    %cst_17 = arith.constant dense<0.000000e+00> : vector<16x64xf32>
    %32 = tpu.matmul %23, %31, %cst_17 {dimension_numbers = #tpu.dot_dimension_numbers<[1], [0], [0], [1], [0, 0, 1, 1], [], []>} : vector<16x32xf32>, vector<32x64xf32>, vector<16x64xf32> -> vector<16x64xf32>
    %c2 = arith.constant 2 : index
    %c0_18 = arith.constant 0 : index
    %c0_19 = arith.constant 0 : index
    %33 = vector.load %arg1[%c2, %c0_18, %c0_19] : memref<4x64x64xf32, #tpu.memory_space<vmem>>, vector<1x64x64xf32>
    %34 = vector.shape_cast %33 : vector<1x64x64xf32> to vector<64x64xf32>
    %35 = tpu.concatenate %29, %29, %29, %29 in 0 : vector<16x64xf32>, vector<16x64xf32>, vector<16x64xf32>, vector<16x64xf32> -> vector<64x64xf32>
    %36 = arith.mulf %35, %34 : vector<64x64xf32>
    %37 = tpu.concatenate %32, %32, %32, %32 in 0 : vector<16x64xf32>, vector<16x64xf32>, vector<16x64xf32>, vector<16x64xf32> -> vector<64x64xf32>
    %38 = arith.mulf %37, %34 : vector<64x64xf32>
    %cst_20 = arith.constant dense<0.000000e+00> : vector<16x64xf32>
    %39 = tpu.matmul %26, %36, %cst_20 {dimension_numbers = #tpu.dot_dimension_numbers<[1], [1], [0], [0], [0, 0, 1, 0], [], []>} : vector<16x64xf32>, vector<64x64xf32>, vector<16x64xf32> -> vector<16x64xf32>
    %cst_21 = arith.constant dense<0xFF800000> : vector<16xf32>
    %40 = vector.multi_reduction <maximumf>, %39, %cst_21 [1] : vector<16x64xf32> to vector<16xf32>
    %41 = vector.shape_cast %40 : vector<16xf32> to vector<16x1xf32>
    %42 = vector.broadcast %41 : vector<16x1xf32> to vector<16x64xf32>
    %43 = arith.subf %39, %42 : vector<16x64xf32>
    %c1_22 = arith.constant 1 : index
    %c32_23 = arith.constant 32 : index
    %c0_24 = arith.constant 0 : index
    %44 = vector.load %arg1[%c1_22, %c32_23, %c0_24] : memref<4x64x64xf32, #tpu.memory_space<vmem>>, vector<1x16x64xf32>
    %45 = vector.shape_cast %44 : vector<1x16x64xf32> to vector<16x64xf32>
    %46 = math.exp %43 : vector<16x64xf32>
    %47 = arith.mulf %46, %45 : vector<16x64xf32>
    %c3 = arith.constant 3 : index
    %c0_25 = arith.constant 0 : index
    %c0_26 = arith.constant 0 : index
    %48 = vector.load %arg1[%c3, %c0_25, %c0_26] : memref<4x64x64xf32, #tpu.memory_space<vmem>>, vector<1x64x64xf32>
    %49 = vector.shape_cast %48 : vector<1x64x64xf32> to vector<64x64xf32>
    %cst_27 = arith.constant dense<0.000000e+00> : vector<16x64xf32>
    %50 = tpu.matmul %47, %49, %cst_27 {dimension_numbers = #tpu.dot_dimension_numbers<[1], [0], [0], [1], [0, 0, 1, 1], [], []>} : vector<16x64xf32>, vector<64x64xf32>, vector<16x64xf32> -> vector<16x64xf32>
    %51 = tpu.reciprocal %50 {approx = true} : vector<16x64xf32> -> vector<16x64xf32>
    %52 = arith.mulf %47, %51 : vector<16x64xf32>
    %cst_28 = arith.constant dense<0.000000e+00> : vector<16x64xf32>
    %53 = tpu.matmul %52, %38, %cst_28 {dimension_numbers = #tpu.dot_dimension_numbers<[1], [0], [0], [1], [0, 0, 1, 1], [], []>} : vector<16x64xf32>, vector<64x64xf32>, vector<16x64xf32> -> vector<16x64xf32>
    %c0_29 = arith.constant 0 : index
    %c0_30 = arith.constant 0 : index
    %54 = vector.load %arg2[%c0_29, %c0_30] : memref<72x32xf32, #tpu.memory_space<vmem>>, vector<64x32xf32>
    %cst_31 = arith.constant dense<0.000000e+00> : vector<16x32xf32>
    %55 = tpu.matmul %53, %54, %cst_31 {dimension_numbers = #tpu.dot_dimension_numbers<[1], [0], [0], [1], [0, 0, 1, 1], [], []>} : vector<16x64xf32>, vector<64x32xf32>, vector<16x32xf32> -> vector<16x32xf32>
    %56 = vector.broadcast %3 : vector<1x32xf32> to vector<16x32xf32>
    %57 = arith.addf %55, %56 : vector<16x32xf32>
    %c0_32 = arith.constant 0 : index
    %c0_33 = arith.constant 0 : index
    %58 = vector.load %arg3[%c0_32, %c0_33] : memref<16x32xf32, #tpu.memory_space<vmem>>, vector<16x32xf32>
    tpu.vector_store %arg3[%c0_32, %c0_33], %57 {strides = array<i32>} : memref<16x32xf32, #tpu.memory_space<vmem>>, vector<16x32xf32>,
    return
  }
}

</mosaic_0001>

<llo_original>
// kernel: attention_forward.1
$region0: #{attention_forward.1}
  #allocation0 [shape = 'u32[]', space=smem, size = 0x4, offset = 0x4, fixed_abs, tag = 'smem constant byte address 0x4 - core index']
  #allocation1 [shape = 'u32[144,128]{1,0:T(1,128)}', space=vmem, size = 0x12000, scoped, tag = 'internal scratch']
  %s0 = inlined_call_operand.vmem [shape: f32[16,32], index: 0, kind: input, shape index: {}]
  %s1 = inlined_call_operand.hbm [shape: f32[4,64,64], index: 1, kind: input, shape index: {}]
  %s2 = inlined_call_operand.vmem [shape: f32[72,32], index: 2, kind: input, shape index: {}]
  %s3 = inlined_call_operand.hbm [shape: f32[16,32], index: 3, kind: output, shape index: {}]
  %s4 = sld [smem:[#allocation0]]
  $region26: #{attention_forward.1} parent=0
    _
  %s6 = ssub.s32 1, %s4
  %s7 = scalar_select 0, %s6, %s4
  $region1: #{attention_forward.1} parent=0
    #allocation2 [shape = 'u8[131072]{0}', space=vmem, size = 0x20000, scoped, tag = 'input window, operand 1, single buffered']
    #allocation3 [shape = 's32[1]{0}', space=sflag, size = 0x4, scoped, tag = 'scoped memory for attention_forward.1']
    #allocation4 [shape = 's32[1]{0}', space=sflag, size = 0x4, scoped, tag = 'scoped memory for attention_forward.1']
    #allocation5 [shape = 'u8[8192]{0}', space=vmem, size = 0x2000, scoped, tag = 'output window, operand 0, single buffered']
    %8 = vsyncpa [#allocation3], 0
    %9 = vsyncpa [#allocation4], 0
    // Predicated region
    $region2: #{attention_forward.1} parent=1 // pred_check
      _
    $region3: #{attention_forward.1} parent=1 // pred_check_branch
      %11 = sbr.rel (0) target = $region5
    $region4: #{attention_forward.1} parent=1 // pred_region
      _
    $region5: #{attention_forward.1} parent=1 // pred_fallthru
      _
    // Predicated region
    $region6: #{attention_forward.1} parent=1 // pred_check
      _
    $region7: #{attention_forward.1} parent=1 // pred_check_branch
      %13 = sbr.rel (0) target = $region9
    $region8: #{attention_forward.1} parent=1 // pred_region
      %s15 = ssub.s32 4096, 4096
      %16 = vsyncadd [#allocation3], %s15
      %s17 = sshll.u32 [#allocation2], 4
      %s18 = int_to_ptr.vmem [resolvable:$true] %s17
      %23 = dma.hbm_to_vmem [thread:$0]  %s1, 4096, %s18, [#allocation3], 128, 128, 8
    $region9: #{attention_forward.1} parent=1 // pred_fallthru
      _
    // Predicated region
    $region10: #{attention_forward.1} parent=1 // pred_check
      _
    $region11: #{attention_forward.1} parent=1 // pred_check_branch
      %25 = sbr.rel (0) target = $region13
    $region12: #{attention_forward.1} parent=1 // pred_region
      _
    $region13: #{attention_forward.1} parent=1 // pred_fallthru
      _
    // Predicated region
    $region14: #{attention_forward.1} parent=1 // pred_check
      _
    $region15: #{attention_forward.1} parent=1 // pred_check_branch
      %27 = sbr.rel (0) target = $region17
    $region16: #{attention_forward.1} parent=1 // pred_region
      %28 = dma.done [#allocation3], 4096
    $region17: #{attention_forward.1} parent=1 // pred_fallthru
      _
    %v29 = vld [vmem:[%s0] sm:$0xff]
    %v30 = vld [vmem:[%s0 + $0x8] sm:$0xff]
    %v31 = vld [vmem:[%s2 + $0x40] sm:$0x1]
    %v32 = vld [vmem:[%s2 + $0x41] sm:$0x1]
    %v33 = vld [vmem:[%s2 + $0x42] sm:$0x1]
    %vm34 = vcmask 261120
    %v35 = vsel %vm34, %v29, 0.0
    %36 = vadd.xlane.f32.xlu0 %v35
    %v37 = vpop.xlane.xlu0 %36
    %v38 = vsel %vm34, %v30, 0.0
    %39 = vadd.xlane.f32.xlu0 %v38
    %v40 = vpop.xlane.xlu0 %39
    %v41 = vrcp.pop 32.0
    %v42 = vmul.f32 %v37, %v41
    %v43 = vmul.f32 %v40, %v41
    %v44 = vsub.f32 %v29, %v42
    %v45 = vsub.f32 %v30, %v43
    %v46 = vmul.f32 %v44, %v44
    %v47 = vmul.f32 %v45, %v45
    %v48 = vsel %vm34, %v46, 0.0
    %49 = vadd.xlane.f32.xlu0 %v48
    %v50 = vpop.xlane.xlu0 %49
    %v51 = vsel %vm34, %v47, 0.0
    %52 = vadd.xlane.f32.xlu0 %v51
    %v53 = vpop.xlane.xlu0 %52
    %v54 = vmul.f32 %v50, %v41
    %v55 = vmul.f32 %v53, %v41
    %v56 = vadd.f32 %v54, 1e-05
    %v57 = vadd.f32 %v55, 1e-05
    %v58 = vrsqrt.pop %v56
    %v59 = vrsqrt.pop %v57
    %v60 = vmul.f32 %v44, %v58
    %v61 = vmul.f32 %v45, %v59
    %v62 = vlaneseq
    %v63 = vshrl.u32 %v62, 7
    %v64 = vsub.s32 0, %v63
    %v65 = vrot.slane %v31, %v64
    %v66 = vmul.f32 %v60, %v65
    %v67 = vmul.f32 %v61, %v65
    %v68 = vlaneseq
    %v69 = vshrl.u32 %v68, 7
    %v70 = vsub.s32 0, %v69
    %v71 = vrot.slane %v32, %v70
    %v72 = vadd.f32 %v66, %v71
    %v73 = vadd.f32 %v67, %v71
    %v74 = vld [vmem:[#allocation2] sm:$0xff]
    %v75 = vld [vmem:[#allocation2 + $0x8] sm:$0xff]
    %v76 = vld [vmem:[#allocation2 + $0x10] sm:$0xff]
    %v77 = vld [vmem:[#allocation2 + $0x18] sm:$0xff]
    %v79 = vsel %vm34, %v72, 0
    %v82 = vsel %vm34, %v73, 0
    %84 = vmatprep.subr.mxu0 0.0
    %85 = vmatpush1.msra.mxu0 %v74
    %86 = vmatprep.subr.mxu0 0.0
    %87 = vmatpush1.msra.mxu0 %v75
    %88 = vmatprep.subr.mxu0 0.0
    %89 = vmatpush1.msra.mxu0 %v76
    %90 = vmatprep.subr.mxu0 0.0
    %91 = vmatpush1.msra.mxu0 %v77
    %92 = vmatprep.subr.mxu0 0.0
    %93 = vmatpush1.msra.mxu0 0.0
    %94 = vmatprep.subr.mxu0 0.0
    %95 = vmatpush1.msra.mxu0 0.0
    %96 = vmatprep.subr.mxu0 0.0
    %97 = vmatpush1.msra.mxu0 0.0
    %98 = vmatprep.subr.mxu0 0.0
    %99 = vmatpush1.msra.mxu0 0.0
    %100 = vmatprep.subr.mxu0 0.0
    %101 = vmatpush1.msra.mxu0 0.0
    %102 = vmatprep.subr.mxu0 0.0
    %103 = vmatpush1.msra.mxu0 0.0
    %104 = vmatprep.subr.mxu0 0.0
    %105 = vmatpush1.msra.mxu0 0.0
    %106 = vmatprep.subr.mxu0 0.0
    %107 = vmatpush1.msra.mxu0 0.0
    %108 = vmatprep.subr.mxu0 0.0
    %109 = vmatpush1.msra.mxu0 0.0
    %110 = vmatprep.subr.mxu0 0.0
    %111 = vmatpush1.msra.mxu0 0.0
    %112 = vmatprep.subr.mxu0 0.0
    %113 = vmatpush1.msra.mxu0 0.0
    %114 = vmatprep.subr.mxu0 0.0
    %115 = vmatpush1.msra.mxu0 0.0
    %116 = vmatprep.subr.mxu0 0.0
    %117 = vmatpush1.msra.mxu0 0.0
    %118 = vmatprep.subr.mxu0 0.0
    %119 = vmatpush1.msra.mxu0 0.0
    %120 = vmatprep.subr.mxu0 0.0
    %121 = vmatpush1.msra.mxu0 0.0
    %122 = vmatprep.subr.mxu0 0.0
    %123 = vmatpush1.msra.mxu0 0.0
    %124 = vmatprep.subr.mxu0 0.0
    %125 = vmatpush1.msra.mxu0 0.0
    %126 = vmatprep.subr.mxu0 0.0
    %127 = vmatpush1.msra.mxu0 0.0
    %128 = vmatprep.subr.mxu0 0.0
    %129 = vmatpush1.msra.mxu0 0.0
    %130 = vmatprep.subr.mxu0 0.0
    %131 = vmatpush1.msra.mxu0 0.0
    %132 = vmatprep.subr.mxu0 0.0
    %133 = vmatpush1.msra.mxu0 0.0
    %134 = vmatprep.subr.mxu0 0.0
    %135 = vmatpush1.msra.mxu0 0.0
    %136 = vmatprep.subr.mxu0 0.0
    %137 = vmatpush1.msra.mxu0 0.0
    %138 = vmatprep.subr.mxu0 0.0
    %139 = vmatpush1.msra.mxu0 0.0
    %140 = vmatprep.subr.mxu0 0.0
    %141 = vmatpush1.msra.mxu0 0.0
    %142 = vmatprep.subr.mxu0 0.0
    %143 = vmatpush1.msra.mxu0 0.0
    %144 = vmatprep.subr.mxu0 0.0
    %145 = vmatpush1.msra.mxu0 0.0
    %146 = vmatprep.subr.mxu0 0.0
    %147 = vmatpush1.msra.mxu0 0.0
    %148 = vmatprep.mubr.f32.mxu0 0.0
    %149 = vmatmul.mubr.f32.gmra.mrb[0].mxu0 %v79
    %v150 = vpop.f32.mrb[0].mxu0
    %v151 = vadd.f32 0.0, %v150
    %v152 = vpop.f32.mrb[0].mxu0
    %153 = vmatprep.mubr.f32.mxu0 0.0
    %154 = vmatmul.mubr.f32.gmra.mrb[0].mxu0 %v82
    %v155 = vpop.f32.mrb[0].mxu0
    %v156 = vadd.f32 0.0, %v155
    %v157 = vpop.f32.mrb[0].mxu0
    %158 = vdwg.mxu0
    %v159 = vld [vmem:[#allocation2 + $0x20] sm:$0xff]
    %v160 = vld [vmem:[#allocation2 + $0x28] sm:$0xff]
    %v161 = vld [vmem:[#allocation2 + $0x30] sm:$0xff]
    %v162 = vld [vmem:[#allocation2 + $0x38] sm:$0xff]
    %163 = vmatprep.subr.mxu0 0.0
    %164 = vmatpush1.msra.mxu0 %v159
    %165 = vmatprep.subr.mxu0 0.0
    %166 = vmatpush1.msra.mxu0 %v160
    %167 = vmatprep.subr.mxu0 0.0
    %168 = vmatpush1.msra.mxu0 %v161
    %169 = vmatprep.subr.mxu0 0.0
    %170 = vmatpush1.msra.mxu0 %v162
    %171 = vmatprep.subr.mxu0 0.0
    %172 = vmatpush1.msra.mxu0 0.0
    %173 = vmatprep.subr.mxu0 0.0
    %174 = vmatpush1.msra.mxu0 0.0
    %175 = vmatprep.subr.mxu0 0.0
    %176 = vmatpush1.msra.mxu0 0.0
    %177 = vmatprep.subr.mxu0 0.0
    %178 = vmatpush1.msra.mxu0 0.0
    %179 = vmatprep.subr.mxu0 0.0
    %180 = vmatpush1.msra.mxu0 0.0
    %181 = vmatprep.subr.mxu0 0.0
    %182 = vmatpush1.msra.mxu0 0.0
    %183 = vmatprep.subr.mxu0 0.0
    %184 = vmatpush1.msra.mxu0 0.0
    %185 = vmatprep.subr.mxu0 0.0
    %186 = vmatpush1.msra.mxu0 0.0
    %187 = vmatprep.subr.mxu0 0.0
    %188 = vmatpush1.msra.mxu0 0.0
    %189 = vmatprep.subr.mxu0 0.0
    %190 = vmatpush1.msra.mxu0 0.0
    %191 = vmatprep.subr.mxu0 0.0
    %192 = vmatpush1.msra.mxu0 0.0
    %193 = vmatprep.subr.mxu0 0.0
    %194 = vmatpush1.msra.mxu0 0.0
    %195 = vmatprep.subr.mxu0 0.0
    %196 = vmatpush1.msra.mxu0 0.0
    %197 = vmatprep.subr.mxu0 0.0
    %198 = vmatpush1.msra.mxu0 0.0
    %199 = vmatprep.subr.mxu0 0.0
    %200 = vmatpush1.msra.mxu0 0.0
    %201 = vmatprep.subr.mxu0 0.0
    %202 = vmatpush1.msra.mxu0 0.0
    %203 = vmatprep.subr.mxu0 0.0
    %204 = vmatpush1.msra.mxu0 0.0
    %205 = vmatprep.subr.mxu0 0.0
    %206 = vmatpush1.msra.mxu0 0.0
    %207 = vmatprep.subr.mxu0 0.0
    %208 = vmatpush1.msra.mxu0 0.0
    %209 = vmatprep.subr.mxu0 0.0
    %210 = vmatpush1.msra.mxu0 0.0
    %211 = vmatprep.subr.mxu0 0.0
    %212 = vmatpush1.msra.mxu0 0.0
    %213 = vmatprep.subr.mxu0 0.0
    %214 = vmatpush1.msra.mxu0 0.0
    %215 = vmatprep.subr.mxu0 0.0
    %216 = vmatpush1.msra.mxu0 0.0
    %217 = vmatprep.subr.mxu0 0.0
    %218 = vmatpush1.msra.mxu0 0.0
    %219 = vmatprep.subr.mxu0 0.0
    %220 = vmatpush1.msra.mxu0 0.0
    %221 = vmatprep.subr.mxu0 0.0
    %222 = vmatpush1.msra.mxu0 0.0
    %223 = vmatprep.subr.mxu0 0.0
    %224 = vmatpush1.msra.mxu0 0.0
    %225 = vmatprep.subr.mxu0 0.0
    %226 = vmatpush1.msra.mxu0 0.0
    %227 = vmatprep.mubr.f32.mxu0 0.0
    %228 = vmatmul.mubr.f32.gmra.mrb[0].mxu0 %v79
    %v229 = vpop.f32.mrb[0].mxu0
    %v230 = vadd.f32 0.0, %v229
    %v231 = vpop.f32.mrb[0].mxu0
    %232 = vmatprep.mubr.f32.mxu0 0.0
    %233 = vmatmul.mubr.f32.gmra.mrb[0].mxu0 %v82
    %v234 = vpop.f32.mrb[0].mxu0
    %v235 = vadd.f32 0.0, %v234
    %v236 = vpop.f32.mrb[0].mxu0
    %237 = vdwg.mxu0
    %s238 = scalar_lea.vmem [#allocation2], 64
    %v239 = vld [vmem:[%s238] sm:$0xff]
    %v240 = vld [vmem:[%s238 + $0x8] sm:$0xff]
    %v241 = vld [vmem:[%s238 + $0x10] sm:$0xff]
    %v242 = vld [vmem:[%s238 + $0x18] sm:$0xff]
    %243 = vmatprep.subr.mxu0 0.0
    %244 = vmatpush1.msra.mxu0 %v239
    %245 = vmatprep.subr.mxu0 0.0
    %246 = vmatpush1.msra.mxu0 %v240
    %247 = vmatprep.subr.mxu0 0.0
    %248 = vmatpush1.msra.mxu0 %v241
    %249 = vmatprep.subr.mxu0 0.0
    %250 = vmatpush1.msra.mxu0 %v242
    %251 = vmatprep.subr.mxu0 0.0
    %252 = vmatpush1.msra.mxu0 0.0
    %253 = vmatprep.subr.mxu0 0.0
    %254 = vmatpush1.msra.mxu0 0.0
    %255 = vmatprep.subr.mxu0 0.0
    %256 = vmatpush1.msra.mxu0 0.0
    %257 = vmatprep.subr.mxu0 0.0
    %258 = vmatpush1.msra.mxu0 0.0
    %259 = vmatprep.subr.mxu0 0.0
    %260 = vmatpush1.msra.mxu0 0.0
    %261 = vmatprep.subr.mxu0 0.0
    %262 = vmatpush1.msra.mxu0 0.0
    %263 = vmatprep.subr.mxu0 0.0
    %264 = vmatpush1.msra.mxu0 0.0
    %265 = vmatprep.subr.mxu0 0.0
    %266 = vmatpush1.msra.mxu0 0.0
    %267 = vmatprep.subr.mxu0 0.0
    %268 = vmatpush1.msra.mxu0 0.0
    %269 = vmatprep.subr.mxu0 0.0
    %270 = vmatpush1.msra.mxu0 0.0
    %271 = vmatprep.subr.mxu0 0.0
    %272 = vmatpush1.msra.mxu0 0.0
    %273 = vmatprep.subr.mxu0 0.0
    %274 = vmatpush1.msra.mxu0 0.0
    %275 = vmatprep.subr.mxu0 0.0
    %276 = vmatpush1.msra.mxu0 0.0
    %277 = vmatprep.subr.mxu0 0.0
    %278 = vmatpush1.msra.mxu0 0.0
    %279 = vmatprep.subr.mxu0 0.0
    %280 = vmatpush1.msra.mxu0 0.0
    %281 = vmatprep.subr.mxu0 0.0
    %282 = vmatpush1.msra.mxu0 0.0
    %283 = vmatprep.subr.mxu0 0.0
    %284 = vmatpush1.msra.mxu0 0.0
    %285 = vmatprep.subr.mxu0 0.0
    %286 = vmatpush1.msra.mxu0 0.0
    %287 = vmatprep.subr.mxu0 0.0
    %288 = vmatpush1.msra.mxu0 0.0
    %289 = vmatprep.subr.mxu0 0.0
    %290 = vmatpush1.msra.mxu0 0.0
    %291 = vmatprep.subr.mxu0 0.0
    %292 = vmatpush1.msra.mxu0 0.0
    %293 = vmatprep.subr.mxu0 0.0
    %294 = vmatpush1.msra.mxu0 0.0
    %295 = vmatprep.subr.mxu0 0.0
    %296 = vmatpush1.msra.mxu0 0.0
    %297 = vmatprep.subr.mxu0 0.0
    %298 = vmatpush1.msra.mxu0 0.0
    %299 = vmatprep.subr.mxu0 0.0
    %300 = vmatpush1.msra.mxu0 0.0
    %301 = vmatprep.subr.mxu0 0.0
    %302 = vmatpush1.msra.mxu0 0.0
    %303 = vmatprep.subr.mxu0 0.0
    %304 = vmatpush1.msra.mxu0 0.0
    %305 = vmatprep.subr.mxu0 0.0
    %306 = vmatpush1.msra.mxu0 0.0
    %307 = vmatprep.mubr.f32.mxu0 0.0
    %308 = vmatmul.mubr.f32.gmra.mrb[0].mxu0 %v79
    %v309 = vpop.f32.mrb[0].mxu0
    %v310 = vadd.f32 0.0, %v309
    %v311 = vpop.f32.mrb[0].mxu0
    %312 = vmatprep.mubr.f32.mxu0 0.0
    %313 = vmatmul.mubr.f32.gmra.mrb[0].mxu0 %v82
    %v314 = vpop.f32.mrb[0].mxu0
    %v315 = vadd.f32 0.0, %v314
    %v316 = vpop.f32.mrb[0].mxu0
    %317 = vdwg.mxu0
    %s318 = scalar_lea.vmem [#allocation2], 128
    %v319 = vld [vmem:[%s318] sm:$0xff]
    %v320 = vld [vmem:[%s318 + $0x8] sm:$0xff]
    %v321 = vld [vmem:[%s318 + $0x10] sm:$0xff]
    %v322 = vld [vmem:[%s318 + $0x18] sm:$0xff]
    %v323 = vld [vmem:[%s318 + $0x20] sm:$0xff]
    %v324 = vld [vmem:[%s318 + $0x28] sm:$0xff]
    %v325 = vld [vmem:[%s318 + $0x30] sm:$0xff]
    %v326 = vld [vmem:[%s318 + $0x38] sm:$0xff]
    %v327 = vmul.f32 %v230, %v319
    %v328 = vmul.f32 %v235, %v320
    %v329 = vmul.f32 %v230, %v321
    %v330 = vmul.f32 %v235, %v322
    %v331 = vmul.f32 %v230, %v323
    %v332 = vmul.f32 %v235, %v324
    %v333 = vmul.f32 %v230, %v325
    %v334 = vmul.f32 %v235, %v326
    %v335 = vmul.f32 %v310, %v319
    %v336 = vmul.f32 %v315, %v320
    %v337 = vmul.f32 %v310, %v321
    %v338 = vmul.f32 %v315, %v322
    %v339 = vmul.f32 %v310, %v323
    %v340 = vmul.f32 %v315, %v324
    %v341 = vmul.f32 %v310, %v325
    %v342 = vmul.f32 %v315, %v326
    %vm343 = vcmask 523264
    %v345 = vsel %vm343, %v151, 0
    %v348 = vsel %vm343, %v156, 0
    %v351 = vsel %vm343, %v327, 0
    %v354 = vsel %vm343, %v328, 0
    %v357 = vsel %vm343, %v329, 0
    %v360 = vsel %vm343, %v330, 0
    %v363 = vsel %vm343, %v331, 0
    %v366 = vsel %vm343, %v332, 0
    %v369 = vsel %vm343, %v333, 0
    %v372 = vsel %vm343, %v334, 0
    %374 = vmatprep.subr.mxu0 0.0
    %375 = vmatpush1.xpose.msra.mxu0 %v351
    %376 = vmatprep.subr.mxu0 0.0
    %377 = vmatpush1.xpose.msra.mxu0 %v354
    %378 = vmatprep.subr.mxu0 0.0
    %379 = vmatpush1.xpose.msra.mxu0 %v357
    %380 = vmatprep.subr.mxu0 0.0
    %381 = vmatpush1.xpose.msra.mxu0 %v360
    %382 = vmatprep.subr.mxu0 0.0
    %383 = vmatpush1.xpose.msra.mxu0 %v363
    %384 = vmatprep.subr.mxu0 0.0
    %385 = vmatpush1.xpose.msra.mxu0 %v366
    %386 = vmatprep.subr.mxu0 0.0
    %387 = vmatpush1.xpose.msra.mxu0 %v369
    %388 = vmatprep.subr.mxu0 0.0
    %389 = vmatpush1.xpose.msra.mxu0 %v372
    %390 = vmatprep.subr.mxu0 0.0
    %391 = vmatpush1.xpose.msra.mxu0 0.0
    %392 = vmatprep.subr.mxu0 0.0
    %393 = vmatpush1.xpose.msra.mxu0 0.0
    %394 = vmatprep.subr.mxu0 0.0
    %395 = vmatpush1.xpose.msra.mxu0 0.0
    %396 = vmatprep.subr.mxu0 0.0
    %397 = vmatpush1.xpose.msra.mxu0 0.0
    %398 = vmatprep.subr.mxu0 0.0
    %399 = vmatpush1.xpose.msra.mxu0 0.0
    %400 = vmatprep.subr.mxu0 0.0
    %401 = vmatpush1.xpose.msra.mxu0 0.0
    %402 = vmatprep.subr.mxu0 0.0
    %403 = vmatpush1.xpose.msra.mxu0 0.0
    %404 = vmatprep.subr.mxu0 0.0
    %405 = vmatpush1.xpose.msra.mxu0 0.0
    %406 = vmatprep.subr.mxu0 0.0
    %407 = vmatpush1.xpose.msra.mxu0 0.0
    %408 = vmatprep.subr.mxu0 0.0
    %409 = vmatpush1.xpose.msra.mxu0 0.0
    %410 = vmatprep.subr.mxu0 0.0
    %411 = vmatpush1.xpose.msra.mxu0 0.0
    %412 = vmatprep.subr.mxu0 0.0
    %413 = vmatpush1.xpose.msra.mxu0 0.0
    %414 = vmatprep.subr.mxu0 0.0
    %415 = vmatpush1.xpose.msra.mxu0 0.0
    %416 = vmatprep.subr.mxu0 0.0
    %417 = vmatpush1.xpose.msra.mxu0 0.0
    %418 = vmatprep.subr.mxu0 0.0
    %419 = vmatpush1.xpose.msra.mxu0 0.0
    %420 = vmatprep.subr.mxu0 0.0
    %421 = vmatpush1.xpose.msra.mxu0 0.0
    %422 = vmatprep.subr.mxu0 0.0
    %423 = vmatpush1.xpose.msra.mxu0 0.0
    %424 = vmatprep.subr.mxu0 0.0
    %425 = vmatpush1.xpose.msra.mxu0 0.0
    %426 = vmatprep.subr.mxu0 0.0
    %427 = vmatpush1.xpose.msra.mxu0 0.0
    %428 = vmatprep.subr.mxu0 0.0
    %429 = vmatpush1.xpose.msra.mxu0 0.0
    %430 = vmatprep.subr.mxu0 0.0
    %431 = vmatpush1.xpose.msra.mxu0 0.0
    %432 = vmatprep.subr.mxu0 0.0
    %433 = vmatpush1.xpose.msra.mxu0 0.0
    %434 = vmatprep.subr.mxu0 0.0
    %435 = vmatpush1.xpose.msra.mxu0 0.0
    %436 = vmatprep.subr.mxu0 0.0
    %437 = vmatpush1.xpose.msra.mxu0 0.0
    %438 = vmatprep.mubr.f32.mxu0 0.0
    %439 = vmatmul.mubr.f32.gmra.mrb[0].mxu0 %v345
    %v440 = vpop.f32.mrb[0].mxu0
    %v441 = vadd.f32 0.0, %v440
    %v442 = vpop.f32.mrb[0].mxu0
    %443 = vmatprep.mubr.f32.mxu0 0.0
    %444 = vmatmul.mubr.f32.gmra.mrb[0].mxu0 %v348
    %v445 = vpop.f32.mrb[0].mxu0
    %v446 = vadd.f32 0.0, %v445
    %v447 = vpop.f32.mrb[0].mxu0
    %448 = vdwg.mxu0
    %v449 = vsel %vm343, %v441, -inf
    %450 = vmax.xlane.f32.xlu0 %v449
    %v451 = vpop.xlane.xlu0 %450
    %v452 = vsel %vm343, %v446, -inf
    %453 = vmax.xlane.f32.xlu0 %v452
    %v454 = vpop.xlane.xlu0 %453
    %v455 = vsub.f32 %v441, %v451
    %v456 = vsub.f32 %v446, %v454
    %v457 = vld [vmem:[%s238 + $0x20] sm:$0xff]
    %v458 = vld [vmem:[%s238 + $0x28] sm:$0xff]
    %v459 = vmul.f32 %v455, 1.442695
    %v460 = vpow.pop %v459
    %v461 = vmul.f32 %v456, 1.442695
    %v462 = vpow.pop %v461
    %v463 = vmul.f32 %v460, %v457
    %v464 = vmul.f32 %v462, %v458
    %s465 = scalar_lea.vmem [#allocation2], 192
    %v466 = vld [vmem:[%s465] sm:$0xff]
    %v467 = vld [vmem:[%s465 + $0x8] sm:$0xff]
    %v468 = vld [vmem:[%s465 + $0x10] sm:$0xff]
    %v469 = vld [vmem:[%s465 + $0x18] sm:$0xff]
    %v470 = vld [vmem:[%s465 + $0x20] sm:$0xff]
    %v471 = vld [vmem:[%s465 + $0x28] sm:$0xff]
    %v472 = vld [vmem:[%s465 + $0x30] sm:$0xff]
    %v473 = vld [vmem:[%s465 + $0x38] sm:$0xff]
    %v475 = vsel %vm343, %v463, 0
    %v478 = vsel %vm343, %v464, 0
    %480 = vmatprep.subr.mxu0 0.0
    %481 = vmatpush1.msra.mxu0 %v466
    %482 = vmatprep.subr.mxu0 0.0
    %483 = vmatpush1.msra.mxu0 %v467
    %484 = vmatprep.subr.mxu0 0.0
    %485 = vmatpush1.msra.mxu0 %v468
    %486 = vmatprep.subr.mxu0 0.0
    %487 = vmatpush1.msra.mxu0 %v469
    %488 = vmatprep.subr.mxu0 0.0
    %489 = vmatpush1.msra.mxu0 %v470
    %490 = vmatprep.subr.mxu0 0.0
    %491 = vmatpush1.msra.mxu0 %v471
    %492 = vmatprep.subr.mxu0 0.0
    %493 = vmatpush1.msra.mxu0 %v472
    %494 = vmatprep.subr.mxu0 0.0
    %495 = vmatpush1.msra.mxu0 %v473
    %496 = vmatprep.subr.mxu0 0.0
    %497 = vmatpush1.msra.mxu0 0.0
    %498 = vmatprep.subr.mxu0 0.0
    %499 = vmatpush1.msra.mxu0 0.0
    %500 = vmatprep.subr.mxu0 0.0
    %501 = vmatpush1.msra.mxu0 0.0
    %502 = vmatprep.subr.mxu0 0.0
    %503 = vmatpush1.msra.mxu0 0.0
    %504 = vmatprep.subr.mxu0 0.0
    %505 = vmatpush1.msra.mxu0 0.0
    %506 = vmatprep.subr.mxu0 0.0
    %507 = vmatpush1.msra.mxu0 0.0
    %508 = vmatprep.subr.mxu0 0.0
    %509 = vmatpush1.msra.mxu0 0.0
    %510 = vmatprep.subr.mxu0 0.0
    %511 = vmatpush1.msra.mxu0 0.0
    %512 = vmatprep.subr.mxu0 0.0
    %513 = vmatpush1.msra.mxu0 0.0
    %514 = vmatprep.subr.mxu0 0.0
    %515 = vmatpush1.msra.mxu0 0.0
    %516 = vmatprep.subr.mxu0 0.0
    %517 = vmatpush1.msra.mxu0 0.0
    %518 = vmatprep.subr.mxu0 0.0
    %519 = vmatpush1.msra.mxu0 0.0
    %520 = vmatprep.subr.mxu0 0.0
    %521 = vmatpush1.msra.mxu0 0.0
    %522 = vmatprep.subr.mxu0 0.0
    %523 = vmatpush1.msra.mxu0 0.0
    %524 = vmatprep.subr.mxu0 0.0
    %525 = vmatpush1.msra.mxu0 0.0
    %526 = vmatprep.subr.mxu0 0.0
    %527 = vmatpush1.msra.mxu0 0.0
    %528 = vmatprep.subr.mxu0 0.0
    %529 = vmatpush1.msra.mxu0 0.0
    %530 = vmatprep.subr.mxu0 0.0
    %531 = vmatpush1.msra.mxu0 0.0
    %532 = vmatprep.subr.mxu0 0.0
    %533 = vmatpush1.msra.mxu0 0.0
    %534 = vmatprep.subr.mxu0 0.0
    %535 = vmatpush1.msra.mxu0 0.0
    %536 = vmatprep.subr.mxu0 0.0
    %537 = vmatpush1.msra.mxu0 0.0
    %538 = vmatprep.subr.mxu0 0.0
    %539 = vmatpush1.msra.mxu0 0.0
    %540 = vmatprep.subr.mxu0 0.0
    %541 = vmatpush1.msra.mxu0 0.0
    %542 = vmatprep.subr.mxu0 0.0
    %543 = vmatpush1.msra.mxu0 0.0
    %544 = vmatprep.mubr.f32.mxu0 0.0
    %545 = vmatmul.mubr.f32.gmra.mrb[0].mxu0 %v475
    %v546 = vpop.f32.mrb[0].mxu0
    %v547 = vadd.f32 0.0, %v546
    %v548 = vpop.f32.mrb[0].mxu0
    %549 = vmatprep.mubr.f32.mxu0 0.0
    %550 = vmatmul.mubr.f32.gmra.mrb[0].mxu0 %v478
    %v551 = vpop.f32.mrb[0].mxu0
    %v552 = vadd.f32 0.0, %v551
    %v553 = vpop.f32.mrb[0].mxu0
    %554 = vdwg.mxu0
    %v555 = vrcp.pop %v547
    %v556 = vrcp.pop %v552
    %v557 = vmul.f32 %v463, %v555
    %v558 = vmul.f32 %v464, %v556
    %v560 = vsel %vm343, %v557, 0
    %v563 = vsel %vm343, %v558, 0
    %565 = vmatprep.subr.mxu0 0.0
    %566 = vmatpush1.msra.mxu0 %v335
    %567 = vmatprep.subr.mxu0 0.0
    %568 = vmatpush1.msra.mxu0 %v336
    %569 = vmatprep.subr.mxu0 0.0
    %570 = vmatpush1.msra.mxu0 %v337
    %571 = vmatprep.subr.mxu0 0.0
    %572 = vmatpush1.msra.mxu0 %v338
    %573 = vmatprep.subr.mxu0 0.0
    %574 = vmatpush1.msra.mxu0 %v339
    %575 = vmatprep.subr.mxu0 0.0
    %576 = vmatpush1.msra.mxu0 %v340
    %577 = vmatprep.subr.mxu0 0.0
    %578 = vmatpush1.msra.mxu0 %v341
    %579 = vmatprep.subr.mxu0 0.0
    %580 = vmatpush1.msra.mxu0 %v342
    %581 = vmatprep.subr.mxu0 0.0
    %582 = vmatpush1.msra.mxu0 0.0
    %583 = vmatprep.subr.mxu0 0.0
    %584 = vmatpush1.msra.mxu0 0.0
    %585 = vmatprep.subr.mxu0 0.0
    %586 = vmatpush1.msra.mxu0 0.0
    %587 = vmatprep.subr.mxu0 0.0
    %588 = vmatpush1.msra.mxu0 0.0
    %589 = vmatprep.subr.mxu0 0.0
    %590 = vmatpush1.msra.mxu0 0.0
    %591 = vmatprep.subr.mxu0 0.0
    %592 = vmatpush1.msra.mxu0 0.0
    %593 = vmatprep.subr.mxu0 0.0
    %594 = vmatpush1.msra.mxu0 0.0
    %595 = vmatprep.subr.mxu0 0.0
    %596 = vmatpush1.msra.mxu0 0.0
    %597 = vmatprep.subr.mxu0 0.0
    %598 = vmatpush1.msra.mxu0 0.0
    %599 = vmatprep.subr.mxu0 0.0
    %600 = vmatpush1.msra.mxu0 0.0
    %601 = vmatprep.subr.mxu0 0.0
    %602 = vmatpush1.msra.mxu0 0.0
    %603 = vmatprep.subr.mxu0 0.0
    %604 = vmatpush1.msra.mxu0 0.0
    %605 = vmatprep.subr.mxu0 0.0
    %606 = vmatpush1.msra.mxu0 0.0
    %607 = vmatprep.subr.mxu0 0.0
    %608 = vmatpush1.msra.mxu0 0.0
    %609 = vmatprep.subr.mxu0 0.0
    %610 = vmatpush1.msra.mxu0 0.0
    %611 = vmatprep.subr.mxu0 0.0
    %612 = vmatpush1.msra.mxu0 0.0
    %613 = vmatprep.subr.mxu0 0.0
    %614 = vmatpush1.msra.mxu0 0.0
    %615 = vmatprep.subr.mxu0 0.0
    %616 = vmatpush1.msra.mxu0 0.0
    %617 = vmatprep.subr.mxu0 0.0
    %618 = vmatpush1.msra.mxu0 0.0
    %619 = vmatprep.subr.mxu0 0.0
    %620 = vmatpush1.msra.mxu0 0.0
    %621 = vmatprep.subr.mxu0 0.0
    %622 = vmatpush1.msra.mxu0 0.0
    %623 = vmatprep.subr.mxu0 0.0
    %624 = vmatpush1.msra.mxu0 0.0
    %625 = vmatprep.subr.mxu0 0.0
    %626 = vmatpush1.msra.mxu0 0.0
    %627 = vmatprep.subr.mxu0 0.0
    %628 = vmatpush1.msra.mxu0 0.0
    %629 = vmatprep.mubr.f32.mxu0 0.0
    %630 = vmatmul.mubr.f32.gmra.mrb[0].mxu0 %v560
    %v631 = vpop.f32.mrb[0].mxu0
    %v632 = vadd.f32 0.0, %v631
    %v633 = vpop.f32.mrb[0].mxu0
    %634 = vmatprep.mubr.f32.mxu0 0.0
    %635 = vmatmul.mubr.f32.gmra.mrb[0].mxu0 %v563
    %v636 = vpop.f32.mrb[0].mxu0
    %v637 = vadd.f32 0.0, %v636
    %v638 = vpop.f32.mrb[0].mxu0
    %639 = vdwg.mxu0
    %v640 = vld [vmem:[%s2] sm:$0xff]
    %v641 = vld [vmem:[%s2 + $0x8] sm:$0xff]
    %v642 = vld [vmem:[%s2 + $0x10] sm:$0xff]
    %v643 = vld [vmem:[%s2 + $0x18] sm:$0xff]
    %v644 = vld [vmem:[%s2 + $0x20] sm:$0xff]
    %v645 = vld [vmem:[%s2 + $0x28] sm:$0xff]
    %v646 = vld [vmem:[%s2 + $0x30] sm:$0xff]
    %v647 = vld [vmem:[%s2 + $0x38] sm:$0xff]
    %v648 = vlaneseq
    %v649 = vshrl.u32 %v648, 7
    %v650 = vsub.s32 0, %v649
    %v651 = vrot.slane %v33, %v650
    %v653 = vsel %vm343, %v632, 0
    %v656 = vsel %vm343, %v637, 0
    %658 = vmatprep.subr.mxu0 0.0
    %659 = vmatpush1.msra.mxu0 %v640
    %660 = vmatprep.subr.mxu0 0.0
    %661 = vmatpush1.msra.mxu0 %v641
    %662 = vmatprep.subr.mxu0 0.0
    %663 = vmatpush1.msra.mxu0 %v642
    %664 = vmatprep.subr.mxu0 0.0
    %665 = vmatpush1.msra.mxu0 %v643
    %666 = vmatprep.subr.mxu0 0.0
    %667 = vmatpush1.msra.mxu0 %v644
    %668 = vmatprep.subr.mxu0 0.0
    %669 = vmatpush1.msra.mxu0 %v645
    %670 = vmatprep.subr.mxu0 0.0
    %671 = vmatpush1.msra.mxu0 %v646
    %672 = vmatprep.subr.mxu0 0.0
    %673 = vmatpush1.msra.mxu0 %v647
    %674 = vmatprep.subr.mxu0 0.0
    %675 = vmatpush1.msra.mxu0 0.0
    %676 = vmatprep.subr.mxu0 0.0
    %677 = vmatpush1.msra.mxu0 0.0
    %678 = vmatprep.subr.mxu0 0.0
    %679 = vmatpush1.msra.mxu0 0.0
    %680 = vmatprep.subr.mxu0 0.0
    %681 = vmatpush1.msra.mxu0 0.0
    %682 = vmatprep.subr.mxu0 0.0
    %683 = vmatpush1.msra.mxu0 0.0
    %684 = vmatprep.subr.mxu0 0.0
    %685 = vmatpush1.msra.mxu0 0.0
    %686 = vmatprep.subr.mxu0 0.0
    %687 = vmatpush1.msra.mxu0 0.0
    %688 = vmatprep.subr.mxu0 0.0
    %689 = vmatpush1.msra.mxu0 0.0
    %690 = vmatprep.subr.mxu0 0.0
    %691 = vmatpush1.msra.mxu0 0.0
    %692 = vmatprep.subr.mxu0 0.0
    %693 = vmatpush1.msra.mxu0 0.0
    %694 = vmatprep.subr.mxu0 0.0
    %695 = vmatpush1.msra.mxu0 0.0
    %696 = vmatprep.subr.mxu0 0.0
    %697 = vmatpush1.msra.mxu0 0.0
    %698 = vmatprep.subr.mxu0 0.0
    %699 = vmatpush1.msra.mxu0 0.0
    %700 = vmatprep.subr.mxu0 0.0
    %701 = vmatpush1.msra.mxu0 0.0
    %702 = vmatprep.subr.mxu0 0.0
    %703 = vmatpush1.msra.mxu0 0.0
    %704 = vmatprep.subr.mxu0 0.0
    %705 = vmatpush1.msra.mxu0 0.0
    %706 = vmatprep.subr.mxu0 0.0
    %707 = vmatpush1.msra.mxu0 0.0
    %708 = vmatprep.subr.mxu0 0.0
    %709 = vmatpush1.msra.mxu0 0.0
    %710 = vmatprep.subr.mxu0 0.0
    %711 = vmatpush1.msra.mxu0 0.0
    %712 = vmatprep.subr.mxu0 0.0
    %713 = vmatpush1.msra.mxu0 0.0
    %714 = vmatprep.subr.mxu0 0.0
    %715 = vmatpush1.msra.mxu0 0.0
    %716 = vmatprep.subr.mxu0 0.0
    %717 = vmatpush1.msra.mxu0 0.0
    %718 = vmatprep.subr.mxu0 0.0
    %719 = vmatpush1.msra.mxu0 0.0
    %720 = vmatprep.subr.mxu0 0.0
    %721 = vmatpush1.msra.mxu0 0.0
    %722 = vmatprep.mubr.f32.mxu0 0.0
    %723 = vmatmul.mubr.f32.gmra.mrb[0].mxu0 %v653
    %v724 = vpop.f32.mrb[0].mxu0
    %v725 = vadd.f32 %v651, %v724
    %v726 = vpop.f32.mrb[0].mxu0
    %727 = vmatprep.mubr.f32.mxu0 0.0
    %728 = vmatmul.mubr.f32.gmra.mrb[0].mxu0 %v656
    %v729 = vpop.f32.mrb[0].mxu0
    %v730 = vadd.f32 %v651, %v729
    %v731 = vpop.f32.mrb[0].mxu0
    %732 = vdwg.mxu0
    %733 = vst.msk [vmem:[#allocation5] sm:$0xff] %vm34, %v725
    %734 = vst.msk [vmem:[#allocation5 + $0x8] sm:$0xff] %vm34, %v730
    // Predicated region
    $region18: #{attention_forward.1} parent=1 // pred_check
      _
    $region19: #{attention_forward.1} parent=1 // pred_check_branch
      %736 = sbr.rel (0) target = $region21
    $region20: #{attention_forward.1} parent=1 // pred_region
      %s738 = ssub.s32 256, 256
      %739 = vsyncadd [#allocation4], %s738
      %s740 = sshll.u32 [#allocation5], 4
      %s741 = int_to_ptr.vmem [resolvable:$true] %s740
      %746 = dma.vmem_to_hbm [thread:$0]  %s741, 256, %s3, [#allocation4], 128, 128, 8
    $region21: #{attention_forward.1} parent=1 // pred_fallthru
      _
    // Predicated region
    $region22: #{attention_forward.1} parent=1 // pred_check
      _
    $region23: #{attention_forward.1} parent=1 // pred_check_branch
      %748 = sbr.rel (0) target = $region25
    $region24: #{attention_forward.1} parent=1 // pred_region
      %749 = dma.done [#allocation4], 256
    $region25: #{attention_forward.1} parent=1 // pred_fallthru
      _
    %750 = vsyncpa [#allocation3], 1
    %751 = vsyncpa [#allocation4], 1

</llo_original>
